<compile_context>
chip_gen: v7x
topology: tpu7x:2x2x1
jax: 0.10.0
libtpu: 0.0.40
codegen_flags: <defaults>
</compile_context>

<pallas_src>
import jax
import jax.numpy as jnp
from jax.experimental import pallas as pl
from jax.experimental.pallas import tpu as pltpu

_EPS = 1e-6          # nn.PairwiseDistance default eps
_LANE = 128
_SUBLANE = 8


def _euclid_kernel(x_ref, y_ref, o_ref):
    # x_ref, y_ref: (TM, D) row tile; o_ref: (1, TM) lane-dense output tile.
    d = x_ref[...].astype(jnp.float32) - y_ref[...].astype(jnp.float32) + _EPS
    ssq = jnp.sum(d * d, axis=-1)                        # (TM,)  XLU reduce
    o_ref[...] = jnp.sqrt(ssq)[None, :].astype(o_ref.dtype)


def _choose_block_rows(bn: int, d: int, itemsize: int) -> int:
    """Pick the row-tile size TM from a VMEM budget.

    Targets ~4 MiB per input block, i.e. 2 inputs x 2 pipeline buffers
    ~= 16 MiB of VMEM -- inside the scoped defaults on v6e/v7x (32 MiB) and
    under the explicit 32 MiB limit we set for v5e.
    """
    target_block_bytes = 4 << 20
    tm = max(1, target_block_bytes // max(d * itemsize, 1))
    if tm >= bn:
        return bn                        # one block covers every row (full dims)
    if tm >= _LANE:
        return (tm // _LANE) * _LANE     # keep output stores lane dense
    # Very large D: fall back to a sublane-aligned tile.
    # TODO(synk): for extreme D (where even an 8-row block overflows VMEM), add
    # a D-reduction grid axis ("arbitrary", last) with an f32 sum-of-squares
    # accumulator and pl.when(k==0)/pl.when(k==last) init / sqrt+store phases.
    return max(_SUBLANE, (tm // _SUBLANE) * _SUBLANE)


def euclidean_similarity(x: jax.Array, y: jax.Array, *, block_rows=None) -> jax.Array:
    """Equivalent of torch.stack([PairwiseDistance(p=2)(x_i, y_i) for x_i, y_i in zip(x, y)])."""
    assert x.shape == y.shape and x.ndim == 3, "expected (B, N, D) inputs"
    B, N, D = x.shape
    BN = B * N
    itemsize = x.dtype.itemsize

    xf = x.reshape(BN, D)
    yf = y.reshape(BN, D)

    tm = _choose_block_rows(BN, D, itemsize) if block_rows is None else min(block_rows, BN)
    grid_rows = pl.cdiv(BN, tm)
    out_dtype = x.dtype                  # match PyTorch: output dtype == input dtype

    out = pl.pallas_call(
        _euclid_kernel,
        out_shape=jax.ShapeDtypeStruct((grid_rows, tm), out_dtype),
        grid_spec=pltpu.PrefetchScalarGridSpec(
            num_scalar_prefetch=0,
            grid=(grid_rows,),
            in_specs=[
                pl.BlockSpec((tm, D), lambda i: (i, 0)),
                pl.BlockSpec((tm, D), lambda i: (i, 0)),
            ],
            out_specs=pl.BlockSpec((1, tm), lambda i: (i, 0)),
        ),
        compiler_params=pltpu.CompilerParams(
            dimension_semantics=("parallel",),
            vmem_limit_bytes=32 * 1024 * 1024,
        ),
        cost_estimate=pl.CostEstimate(
            flops=3 * BN * D,
            transcendentals=BN,
            bytes_accessed=2 * BN * D * itemsize + BN * itemsize,
        ),
    )(xf, yf)

    # Drop the padded tail rows of the last tile and restore (B, N).
    return out.reshape(-1)[:BN].reshape(B, N)


def _reference(x, y):
    d = x.astype(jnp.float32) - y.astype(jnp.float32) + _EPS
    return jnp.sqrt(jnp.sum(d * d, axis=-1)).astype(x.dtype)


if __name__ == "__main__":
    key = jax.random.PRNGKey(0)
    kx, ky = jax.random.split(key)

    # Small shape consistent with the module: batch=2, pairs-per-batch=8, hidden=32.
    B, N, D = 2, 8, 32
    x = jax.random.normal(kx, (B, N, D), dtype=jnp.float32)
    y = jax.random.normal(ky, (B, N, D), dtype=jnp.float32)

    out = euclidean_similarity(x, y)
    jax.block_until_ready(out)
    ref = _reference(x, y)
    assert out.shape == (B, N)
    assert jnp.allclose(out, ref, atol=1e-5, rtol=1e-5)

    # Exercise the multi-tile path (row count not divisible by the tile, forced TM).
    B2, N2, D2 = 2, 500, 128
    k2x, k2y = jax.random.split(jax.random.PRNGKey(1))
    x2 = jax.random.normal(k2x, (B2, N2, D2), dtype=jnp.float32)
    y2 = jax.random.normal(k2y, (B2, N2, D2), dtype=jnp.float32)
    out2 = euclidean_similarity(x2, y2, block_rows=128)
    jax.block_until_ready(out2)
    ref2 = _reference(x2, y2)
    assert out2.shape == (B2, N2)
    assert jnp.allclose(out2, ref2, atol=1e-4, rtol=1e-5)

    print("KERNEL_OK")
</pallas_src>

<mosaic_0001>
module attributes {stable_mosaic.version = 11 : i64} {
  func.func @_euclid_kernel(%arg0: i32, %arg1: memref<16x32xf32, #tpu.memory_space<vmem>>, %arg2: memref<16x32xf32, #tpu.memory_space<vmem>>, %arg3: memref<1x16xf32, #tpu.memory_space<vmem>>) attributes {dimension_semantics = [#tpu.dimension_semantics<parallel>], iteration_bounds = array<i64: 1>, scalar_prefetch = 0 : i64, scratch_operands = 0 : i64, tpu.core_type = #tpu.core_type<tc>, window_params = [{transform_indices = @transform_0, window_bounds = array<i64: 16, 32>}, {transform_indices = @transform_1, window_bounds = array<i64: 16, 32>}, {transform_indices = @transform_2, window_bounds = array<i64: 1, 16>}]} {
    %c0 = arith.constant 0 : index
    %c0_0 = arith.constant 0 : index
    %0 = vector.load %arg1[%c0, %c0_0] : memref<16x32xf32, #tpu.memory_space<vmem>>, vector<16x32xf32>
    %c0_1 = arith.constant 0 : index
    %c0_2 = arith.constant 0 : index
    %1 = vector.load %arg2[%c0_1, %c0_2] : memref<16x32xf32, #tpu.memory_space<vmem>>, vector<16x32xf32>
    %2 = arith.subf %0, %1 : vector<16x32xf32>
    %cst = arith.constant 9.99999997E-7 : f32
    %3 = vector.broadcast %cst : f32 to vector<16x32xf32>
    %4 = arith.addf %2, %3 : vector<16x32xf32>
    %5 = arith.mulf %4, %4 : vector<16x32xf32>
    %cst_3 = arith.constant dense<0.000000e+00> : vector<16xf32>
    %6 = vector.multi_reduction <add>, %5, %cst_3 [1] : vector<16x32xf32> to vector<16xf32>
    %7 = math.sqrt %6 : vector<16xf32>
    %8 = vector.shape_cast %7 : vector<16xf32> to vector<1x16xf32>
    %c0_4 = arith.constant 0 : index
    %c0_5 = arith.constant 0 : index
    %9 = vector.load %arg3[%c0_4, %c0_5] : memref<1x16xf32, #tpu.memory_space<vmem>>, vector<1x16xf32>
    tpu.vector_store %arg3[%c0_4, %c0_5], %8 {strides = array<i32>} : memref<1x16xf32, #tpu.memory_space<vmem>>, vector<1x16xf32>,
    return
  }
  func.func @transform_0(%arg0: i32) -> (i32, i32) {
    %c0_i32 = arith.constant 0 : i32
    %c0_i32_0 = arith.constant 0 : i32
    return %arg0, %c0_i32 : i32, i32
  }
  func.func @transform_1(%arg0: i32) -> (i32, i32) {
    %c0_i32 = arith.constant 0 : i32
    %c0_i32_0 = arith.constant 0 : i32
    return %arg0, %c0_i32 : i32, i32
  }
  func.func @transform_2(%arg0: i32) -> (i32, i32) {
    %c0_i32 = arith.constant 0 : i32
    %c0_i32_0 = arith.constant 0 : i32
    return %arg0, %c0_i32 : i32, i32
  }
}

</mosaic_0001>

<llo_original>
// kernel: tpu_custom_call.1
$region0: #{tpu_custom_call.1}
  #allocation0 [shape = 'u32[]', space=smem, size = 0x4, offset = 0x4, fixed_abs, tag = 'smem constant byte address 0x4 - core index']
  #allocation1 [shape = 'u32[144,128]{1,0:T(1,128)}', space=vmem, size = 0x12000, scoped, tag = 'internal scratch']
  %s0 = inlined_call_operand.hbm [shape: f32[16,32], index: 0, kind: input, shape index: {}]
  %s1 = inlined_call_operand.hbm [shape: f32[16,32], index: 1, kind: input, shape index: {}]
  %s2 = inlined_call_operand.hbm [shape: f32[1,16], index: 2, kind: output, shape index: {}]
  %s3 = sld [smem:[#allocation0]]
  $region26: #{tpu_custom_call.1} parent=0
    _
  %s5 = ssub.s32 1, %s3
  %s6 = scalar_select 0, %s5, %s3
  $region1: #{tpu_custom_call.1} parent=0
    #allocation2 [shape = 'u8[8192]{0}', space=vmem, size = 0x2000, scoped, tag = 'input window, operand 0, single buffered']
    #allocation3 [shape = 's32[1]{0}', space=sflag, size = 0x4, scoped, tag = 'scoped memory for tpu_custom_call.1']
    #allocation4 [shape = 's32[1]{0}', space=sflag, size = 0x4, scoped, tag = 'scoped memory for tpu_custom_call.1']
    #allocation5 [shape = 'u8[8192]{0}', space=vmem, size = 0x2000, scoped, tag = 'input window, operand 1, single buffered']
    #allocation6 [shape = 's32[1]{0}', space=sflag, size = 0x4, scoped, tag = 'scoped memory for tpu_custom_call.1']
    #allocation7 [shape = 'u8[512]{0}', space=vmem, size = 0x400, scoped, tag = 'output window, operand 0, single buffered']
    %7 = vsyncpa [#allocation3], 0
    %8 = vsyncpa [#allocation6], 0
    %9 = vsyncpa [#allocation4], 0
    // Predicated region
    $region2: #{tpu_custom_call.1} parent=1 // pred_check
      _
    $region3: #{tpu_custom_call.1} parent=1 // pred_check_branch
      %11 = sbr.rel (0) target = $region5
    $region4: #{tpu_custom_call.1} parent=1 // pred_region
      %s13 = ssub.s32 256, 256
      %14 = vsyncadd [#allocation3], %s13
      %s15 = sshll.u32 [#allocation2], 4
      %s16 = int_to_ptr.vmem [resolvable:$true] %s15
      %21 = dma.hbm_to_vmem [thread:$0]  %s0, 256, %s16, [#allocation3], 128, 128, 8
    $region5: #{tpu_custom_call.1} parent=1 // pred_fallthru
      _
    // Predicated region
    $region6: #{tpu_custom_call.1} parent=1 // pred_check
      _
    $region7: #{tpu_custom_call.1} parent=1 // pred_check_branch
      %23 = sbr.rel (0) target = $region9
    $region8: #{tpu_custom_call.1} parent=1 // pred_region
      %s25 = ssub.s32 256, 256
      %26 = vsyncadd [#allocation6], %s25
      %s27 = sshll.u32 [#allocation5], 4
      %s28 = int_to_ptr.vmem [resolvable:$true] %s27
      %33 = dma.hbm_to_vmem [thread:$0]  %s1, 256, %s28, [#allocation6], 128, 128, 8
    $region9: #{tpu_custom_call.1} parent=1 // pred_fallthru
      _
    // Predicated region
    $region10: #{tpu_custom_call.1} parent=1 // pred_check
      _
    $region11: #{tpu_custom_call.1} parent=1 // pred_check_branch
      %35 = sbr.rel (0) target = $region13
    $region12: #{tpu_custom_call.1} parent=1 // pred_region
      %36 = dma.done [#allocation3], 256
    $region13: #{tpu_custom_call.1} parent=1 // pred_fallthru
      _
    // Predicated region
    $region14: #{tpu_custom_call.1} parent=1 // pred_check
      _
    $region15: #{tpu_custom_call.1} parent=1 // pred_check_branch
      %38 = sbr.rel (0) target = $region17
    $region16: #{tpu_custom_call.1} parent=1 // pred_region
      %39 = dma.done [#allocation6], 256
    $region17: #{tpu_custom_call.1} parent=1 // pred_fallthru
      _
    %v40 = vld [vmem:[#allocation2] sm:$0xff]
    %v41 = vld [vmem:[#allocation2 + $0x8] sm:$0xff]
    %v42 = vld [vmem:[#allocation5] sm:$0xff]
    %v43 = vld [vmem:[#allocation5 + $0x8] sm:$0xff]
    %v44 = vsub.f32 %v40, %v42
    %v45 = vsub.f32 %v41, %v43
    %v46 = vadd.f32 %v44, 1e-06
    %v47 = vadd.f32 %v45, 1e-06
    %v48 = vmul.f32 %v46, %v46
    %v49 = vmul.f32 %v47, %v47
    %vm50 = vcmask 261120
    %v51 = vsel %vm50, %v48, 0.0
    %52 = vadd.xlane.f32.xlu0 %v51
    %v53 = vpop.xlane.xlu0 %52
    %v54 = vsel %vm50, %v49, 0.0
    %55 = vadd.xlane.f32.xlu0 %v54
    %v56 = vpop.xlane.xlu0 %55
    %v57 = vrsqrt.pop %v53
    %v58 = vmul.f32 %v53, %v57
    %vm59 = vcmp.eq.f32.partialorder %v53, inf
    %v60 = vsel %vm59, %v53, %v58
    %vm61 = vcmp.eq.f32.partialorder %v53, 0.0
    %v62 = vand.u32 %v53, 2147483648
    %v63 = vsel %vm61, %v62, %v60
    %v64 = vrsqrt.pop %v56
    %v65 = vmul.f32 %v56, %v64
    %vm66 = vcmp.eq.f32.partialorder %v56, inf
    %v67 = vsel %vm66, %v56, %v65
    %vm68 = vcmp.eq.f32.partialorder %v56, 0.0
    %v69 = vand.u32 %v56, 2147483648
    %v70 = vsel %vm68, %v69, %v67
    %v73 = vlaneseq
    %v74 = vand.u32 %v73, 127
    %v75 = vlaneseq
    %v76 = vshrl.u32 %v75, 7
    %v77 = vsub.s32 %v74, %v76
    %v78 = vrot.slane %v63, %v77
    %v79 = vadd.s32 %v74, 4294967288
    %v80 = vlaneseq
    %v81 = vshrl.u32 %v80, 7
    %v82 = vsub.s32 %v79, %v81
    %v83 = vrot.slane %v70, %v82
    %vm84 = vcmask 130112
    %v85 = vsel %vm84, %v83, %v78
    %vm87 = vcmask 122880
    %88 = vst.msk [vmem:[#allocation7] sm:$0x1] %vm87, %v85
    // Predicated region
    $region18: #{tpu_custom_call.1} parent=1 // pred_check
      _
    $region19: #{tpu_custom_call.1} parent=1 // pred_check_branch
      %90 = sbr.rel (0) target = $region21
    $region20: #{tpu_custom_call.1} parent=1 // pred_region
      %s92 = ssub.s32 16, 16
      %93 = vsyncadd [#allocation4], %s92
      %s95 = sshll.u32 [#allocation7], 4
      %s96 = int_to_ptr.vmem [resolvable:$true] %s95
      %98 = dma.vmem_to_hbm [thread:$0]  %s96, 16, %s2, [#allocation4]
    $region21: #{tpu_custom_call.1} parent=1 // pred_fallthru
      _
    // Predicated region
    $region22: #{tpu_custom_call.1} parent=1 // pred_check
      _
    $region23: #{tpu_custom_call.1} parent=1 // pred_check_branch
      %100 = sbr.rel (0) target = $region25
    $region24: #{tpu_custom_call.1} parent=1 // pred_region
      %101 = dma.done [#allocation4], 16
    $region25: #{tpu_custom_call.1} parent=1 // pred_fallthru
      _
    %102 = vsyncpa [#allocation3], 1
    %103 = vsyncpa [#allocation6], 1
    %104 = vsyncpa [#allocation4], 1

</llo_original>
